<compile_context>
chip_gen: v7x
topology: tpu7x:2x2x1
jax: 0.10.0
libtpu: 0.0.40
codegen_flags: <defaults>
</compile_context>

<pallas_src>
import functools

import jax
import jax.numpy as jnp
from jax.experimental import pallas as pl
from jax.experimental.pallas import tpu as pltpu


def _harmonic_kernel(x_ref, o_ref, *, n_freqs, omega0, logspace, include_input):
    """x_ref: (C, bn) f32 feature-major block; o_ref: (bn, out_dim) row-major."""
    x = x_ref[...]                         # (C, bn) f32, rows on the lane axis
    C = x.shape[0]
    bn = x.shape[1]
    F = n_freqs
    out_dim = 2 * C * F + (C if include_input else 0)

    # ---- sin/cos for every (channel, frequency), lane-dense on (C, bn) ----
    use_recurrence = logspace and F <= 10   # error grows ~2^k; fine for F<=10
    if use_recurrence:
        # frequencies are omega0 * 2**k -> angle doubling:
        #   sin(2a) = 2 sin a cos a,  cos(2a) = 1 - 2 sin^2 a
        theta = x * omega0
        s = jnp.sin(theta)
        co = jnp.cos(theta)
        sins = [s]
        coss = [co]
        for _ in range(F - 1):
            s, co = 2.0 * s * co, 1.0 - 2.0 * s * s
            sins.append(s)
            coss.append(co)
    else:
        if logspace:
            freqs = [omega0 * (2.0 ** k) for k in range(F)]
        else:
            step = (2.0 ** (F - 1) - 1.0) / (F - 1) if F > 1 else 0.0
            freqs = [omega0 * (1.0 + k * step) for k in range(F)]
        sins = [jnp.sin(f * x) for f in freqs]
        coss = [jnp.cos(f * x) for f in freqs]

    # ---- assemble one feature-major tile in torch's row order -------------
    # sin (channel-major, freq-minor), then cos, then the raw input.
    rows = []
    for c in range(C):
        rows.extend(sins[k][c:c + 1, :] for k in range(F))
    for c in range(C):
        rows.extend(coss[k][c:c + 1, :] for k in range(F))
    if include_input:
        rows.append(x)
    pad_rows = (-out_dim) % 8              # keep the transpose 8-sublane aligned
    if pad_rows:
        rows.append(jnp.zeros((pad_rows, bn), jnp.float32))
    fm = jnp.concatenate(rows, axis=0)     # (out_dim_padded, bn) f32

    # One in-VMEM relayout (XLU) + one dense store: the row-major result never
    # makes an extra HBM round trip.  Cast to the output dtype only here.
    o_ref[...] = fm.T[:, :out_dim].astype(o_ref.dtype)


def harmonic_embedding(x, *, n_harmonic_functions=6, omega0=1.0, logspace=True,
                       include_input=True, block_n=8192,
                       out_dtype=jnp.float32):
    """x: (..., C) -> (..., 2*F*C [+ C]).

    out_dtype=jnp.bfloat16 halves the dominant HBM write stream (the output is
    ~13x the input bytes); sin/cos math stays in f32 either way.  Default is
    f32 to match the PyTorch module exactly.
    """
    orig_shape = x.shape
    C = int(orig_shape[-1])
    F = int(n_harmonic_functions)
    n = 1
    for d in orig_shape[:-1]:
        n *= int(d)
    out_dim = 2 * F * C + (C if include_input else 0)

    # ---- lane-tile (rows per grid step) ----
    req = max(128, (int(block_n) // 128) * 128)
    if n >= 256:
        # Multiple of 128, <= n/2 so the grid always has >= 2 steps
        # (keeps both v7x TensorCores busy under dimension_semantics=parallel).
        bn = min(req, max(128, (n // 2) // 128 * 128))
        grid = -(-n // bn)
        out_rows = n            # exact: last partial block's store is masked,
        slice_rows = False      # so no extra wrapper pass over the output.
    else:
        bn = ((n + 127) // 128) * 128     # tiny input: one exactly-divided block
        grid = 1
        out_rows = bn
        slice_rows = out_rows != n

    n_in = grid * bn            # pad only the cheap input (12 B/row)

    # Single fused prep op over the small input: cast + feature-major transpose.
    xT = x.reshape(n, C).astype(jnp.float32).T           # (C, n)
    if n_in != n:
        xT = jnp.pad(xT, ((0, 0), (0, n_in - n)))

    kernel = functools.partial(_harmonic_kernel,
                               n_freqs=F,
                               omega0=float(omega0),
                               logspace=bool(logspace),
                               include_input=bool(include_input))

    out = pl.pallas_call(
        kernel,
        out_shape=jax.ShapeDtypeStruct((out_rows, out_dim), out_dtype),
        grid_spec=pltpu.PrefetchScalarGridSpec(
            num_scalar_prefetch=0,
            grid=(grid,),
            in_specs=[pl.BlockSpec((C, bn), lambda i: (0, i))],
            out_specs=pl.BlockSpec((bn, out_dim), lambda i: (i, 0)),
        ),
        compiler_params=pltpu.CompilerParams(
            dimension_semantics=("parallel",)),
    )(xT)

    if slice_rows:
        out = out[:n]           # tiny inputs only; large inputs are exact
    return out.reshape(*orig_shape[:-1], out_dim)


def _reference(x, *, n_harmonic_functions=6, omega0=1.0, logspace=True,
               include_input=True):
    if logspace:
        freqs = 2.0 ** jnp.arange(n_harmonic_functions, dtype=jnp.float32)
    else:
        freqs = jnp.linspace(1.0, 2.0 ** (n_harmonic_functions - 1),
                             n_harmonic_functions, dtype=jnp.float32)
    freqs = omega0 * freqs
    embed = (x[..., None] * freqs).reshape(*x.shape[:-1], -1)
    pieces = [jnp.sin(embed), jnp.cos(embed)]
    if include_input:
        pieces.append(x)
    return jnp.concatenate(pieces, axis=-1)


if __name__ == "__main__":
    key = jax.random.PRNGKey(0)

    # NeRF-like input: batch=2, 16 samples per ray, 3 coordinate channels.
    x = jax.random.normal(key, (2, 16, 3), dtype=jnp.float32)
    out = jax.block_until_ready(harmonic_embedding(x))
    ref = _reference(x)
    assert out.shape == (2, 16, 39), out.shape
    # Angle-doubling recurrence loses a few bits at the top harmonic (F=6).
    assert jnp.allclose(out, ref, atol=1e-4, rtol=1e-4), \
        float(jnp.max(jnp.abs(out - ref)))

    # linspace frequencies -> exact per-frequency sin/cos path.
    out_lin = jax.block_until_ready(harmonic_embedding(x, logspace=False))
    ref_lin = _reference(x, logspace=False)
    assert jnp.allclose(out_lin, ref_lin, atol=1e-5, rtol=1e-5)

    # Non-multiple row count: multi-step grid + masked final output block.
    x2 = jax.random.normal(jax.random.PRNGKey(1), (4, 300, 3),
                           dtype=jnp.float32)
    out2 = jax.block_until_ready(
        harmonic_embedding(x2, include_input=False, block_n=1024))
    ref2 = _reference(x2, include_input=False)
    assert out2.shape == (4, 300, 36), out2.shape
    assert jnp.allclose(out2, ref2, atol=1e-4, rtol=1e-4), \
        float(jnp.max(jnp.abs(out2 - ref2)))

    # bf16 output (recommended on v5e/v6e when the consumer tolerates it).
    out_bf = jax.block_until_ready(
        harmonic_embedding(x2, out_dtype=jnp.bfloat16))
    ref_bf = _reference(x2)
    assert out_bf.dtype == jnp.bfloat16
    assert jnp.allclose(out_bf.astype(jnp.float32), ref_bf,
                        atol=3e-2, rtol=3e-2)

    print("KERNEL_OK")
</pallas_src>

<mosaic_0001>
module attributes {stable_mosaic.version = 11 : i64} {
  func.func @_harmonic_kernel(%arg0: i32, %arg1: memref<3x128xf32, #tpu.memory_space<vmem>>, %arg2: memref<128x39xf32, #tpu.memory_space<vmem>>) attributes {dimension_semantics = [#tpu.dimension_semantics<parallel>], iteration_bounds = array<i64: 1>, scalar_prefetch = 0 : i64, scratch_operands = 0 : i64, tpu.core_type = #tpu.core_type<tc>, window_params = [{transform_indices = @transform_0, window_bounds = array<i64: 3, 128>}, {transform_indices = @transform_1, window_bounds = array<i64: 128, 39>}]} {
    %c0 = arith.constant 0 : index
    %c0_0 = arith.constant 0 : index
    %0 = vector.load %arg1[%c0, %c0_0] : memref<3x128xf32, #tpu.memory_space<vmem>>, vector<3x128xf32>
    %cst = arith.constant 1.000000e+00 : f32
    %1 = vector.broadcast %cst : f32 to vector<3x128xf32>
    %2 = arith.mulf %0, %1 : vector<3x128xf32>
    %3 = math.sin %2 : vector<3x128xf32>
    %4 = math.cos %2 : vector<3x128xf32>
    %cst_1 = arith.constant 2.000000e+00 : f32
    %5 = vector.broadcast %cst_1 : f32 to vector<3x128xf32>
    %6 = arith.mulf %5, %3 : vector<3x128xf32>
    %7 = arith.mulf %6, %4 : vector<3x128xf32>
    %cst_2 = arith.constant 2.000000e+00 : f32
    %8 = vector.broadcast %cst_2 : f32 to vector<3x128xf32>
    %9 = arith.mulf %8, %3 : vector<3x128xf32>
    %10 = arith.mulf %9, %3 : vector<3x128xf32>
    %cst_3 = arith.constant 1.000000e+00 : f32
    %11 = vector.broadcast %cst_3 : f32 to vector<3x128xf32>
    %12 = arith.subf %11, %10 : vector<3x128xf32>
    %cst_4 = arith.constant 2.000000e+00 : f32
    %13 = vector.broadcast %cst_4 : f32 to vector<3x128xf32>
    %14 = arith.mulf %13, %7 : vector<3x128xf32>
    %15 = arith.mulf %14, %12 : vector<3x128xf32>
    %cst_5 = arith.constant 2.000000e+00 : f32
    %16 = vector.broadcast %cst_5 : f32 to vector<3x128xf32>
    %17 = arith.mulf %16, %7 : vector<3x128xf32>
    %18 = arith.mulf %17, %7 : vector<3x128xf32>
    %cst_6 = arith.constant 1.000000e+00 : f32
    %19 = vector.broadcast %cst_6 : f32 to vector<3x128xf32>
    %20 = arith.subf %19, %18 : vector<3x128xf32>
    %cst_7 = arith.constant 2.000000e+00 : f32
    %21 = vector.broadcast %cst_7 : f32 to vector<3x128xf32>
    %22 = arith.mulf %21, %15 : vector<3x128xf32>
    %23 = arith.mulf %22, %20 : vector<3x128xf32>
    %cst_8 = arith.constant 2.000000e+00 : f32
    %24 = vector.broadcast %cst_8 : f32 to vector<3x128xf32>
    %25 = arith.mulf %24, %15 : vector<3x128xf32>
    %26 = arith.mulf %25, %15 : vector<3x128xf32>
    %cst_9 = arith.constant 1.000000e+00 : f32
    %27 = vector.broadcast %cst_9 : f32 to vector<3x128xf32>
    %28 = arith.subf %27, %26 : vector<3x128xf32>
    %cst_10 = arith.constant 2.000000e+00 : f32
    %29 = vector.broadcast %cst_10 : f32 to vector<3x128xf32>
    %30 = arith.mulf %29, %23 : vector<3x128xf32>
    %31 = arith.mulf %30, %28 : vector<3x128xf32>
    %cst_11 = arith.constant 2.000000e+00 : f32
    %32 = vector.broadcast %cst_11 : f32 to vector<3x128xf32>
    %33 = arith.mulf %32, %23 : vector<3x128xf32>
    %34 = arith.mulf %33, %23 : vector<3x128xf32>
    %cst_12 = arith.constant 1.000000e+00 : f32
    %35 = vector.broadcast %cst_12 : f32 to vector<3x128xf32>
    %36 = arith.subf %35, %34 : vector<3x128xf32>
    %cst_13 = arith.constant 2.000000e+00 : f32
    %37 = vector.broadcast %cst_13 : f32 to vector<3x128xf32>
    %38 = arith.mulf %37, %31 : vector<3x128xf32>
    %39 = arith.mulf %38, %36 : vector<3x128xf32>
    %cst_14 = arith.constant 2.000000e+00 : f32
    %40 = vector.broadcast %cst_14 : f32 to vector<3x128xf32>
    %41 = arith.mulf %40, %31 : vector<3x128xf32>
    %42 = arith.mulf %41, %31 : vector<3x128xf32>
    %cst_15 = arith.constant 1.000000e+00 : f32
    %43 = vector.broadcast %cst_15 : f32 to vector<3x128xf32>
    %44 = arith.subf %43, %42 : vector<3x128xf32>
    %45 = vector.extract_strided_slice %3 {offsets = [0, 0], sizes = [1, 128], strides = [1, 1]} : vector<3x128xf32> to vector<1x128xf32>
    %46 = vector.extract_strided_slice %7 {offsets = [0, 0], sizes = [1, 128], strides = [1, 1]} : vector<3x128xf32> to vector<1x128xf32>
    %47 = vector.extract_strided_slice %15 {offsets = [0, 0], sizes = [1, 128], strides = [1, 1]} : vector<3x128xf32> to vector<1x128xf32>
    %48 = vector.extract_strided_slice %23 {offsets = [0, 0], sizes = [1, 128], strides = [1, 1]} : vector<3x128xf32> to vector<1x128xf32>
    %49 = vector.extract_strided_slice %31 {offsets = [0, 0], sizes = [1, 128], strides = [1, 1]} : vector<3x128xf32> to vector<1x128xf32>
    %50 = vector.extract_strided_slice %39 {offsets = [0, 0], sizes = [1, 128], strides = [1, 1]} : vector<3x128xf32> to vector<1x128xf32>
    %51 = vector.extract_strided_slice %3 {offsets = [1, 0], sizes = [1, 128], strides = [1, 1]} : vector<3x128xf32> to vector<1x128xf32>
    %52 = vector.extract_strided_slice %7 {offsets = [1, 0], sizes = [1, 128], strides = [1, 1]} : vector<3x128xf32> to vector<1x128xf32>
    %53 = vector.extract_strided_slice %15 {offsets = [1, 0], sizes = [1, 128], strides = [1, 1]} : vector<3x128xf32> to vector<1x128xf32>
    %54 = vector.extract_strided_slice %23 {offsets = [1, 0], sizes = [1, 128], strides = [1, 1]} : vector<3x128xf32> to vector<1x128xf32>
    %55 = vector.extract_strided_slice %31 {offsets = [1, 0], sizes = [1, 128], strides = [1, 1]} : vector<3x128xf32> to vector<1x128xf32>
    %56 = vector.extract_strided_slice %39 {offsets = [1, 0], sizes = [1, 128], strides = [1, 1]} : vector<3x128xf32> to vector<1x128xf32>
    %57 = vector.extract_strided_slice %3 {offsets = [2, 0], sizes = [1, 128], strides = [1, 1]} : vector<3x128xf32> to vector<1x128xf32>
    %58 = vector.extract_strided_slice %7 {offsets = [2, 0], sizes = [1, 128], strides = [1, 1]} : vector<3x128xf32> to vector<1x128xf32>
    %59 = vector.extract_strided_slice %15 {offsets = [2, 0], sizes = [1, 128], strides = [1, 1]} : vector<3x128xf32> to vector<1x128xf32>
    %60 = vector.extract_strided_slice %23 {offsets = [2, 0], sizes = [1, 128], strides = [1, 1]} : vector<3x128xf32> to vector<1x128xf32>
    %61 = vector.extract_strided_slice %31 {offsets = [2, 0], sizes = [1, 128], strides = [1, 1]} : vector<3x128xf32> to vector<1x128xf32>
    %62 = vector.extract_strided_slice %39 {offsets = [2, 0], sizes = [1, 128], strides = [1, 1]} : vector<3x128xf32> to vector<1x128xf32>
    %63 = vector.extract_strided_slice %4 {offsets = [0, 0], sizes = [1, 128], strides = [1, 1]} : vector<3x128xf32> to vector<1x128xf32>
    %64 = vector.extract_strided_slice %12 {offsets = [0, 0], sizes = [1, 128], strides = [1, 1]} : vector<3x128xf32> to vector<1x128xf32>
    %65 = vector.extract_strided_slice %20 {offsets = [0, 0], sizes = [1, 128], strides = [1, 1]} : vector<3x128xf32> to vector<1x128xf32>
    %66 = vector.extract_strided_slice %28 {offsets = [0, 0], sizes = [1, 128], strides = [1, 1]} : vector<3x128xf32> to vector<1x128xf32>
    %67 = vector.extract_strided_slice %36 {offsets = [0, 0], sizes = [1, 128], strides = [1, 1]} : vector<3x128xf32> to vector<1x128xf32>
    %68 = vector.extract_strided_slice %44 {offsets = [0, 0], sizes = [1, 128], strides = [1, 1]} : vector<3x128xf32> to vector<1x128xf32>
    %69 = vector.extract_strided_slice %4 {offsets = [1, 0], sizes = [1, 128], strides = [1, 1]} : vector<3x128xf32> to vector<1x128xf32>
    %70 = vector.extract_strided_slice %12 {offsets = [1, 0], sizes = [1, 128], strides = [1, 1]} : vector<3x128xf32> to vector<1x128xf32>
    %71 = vector.extract_strided_slice %20 {offsets = [1, 0], sizes = [1, 128], strides = [1, 1]} : vector<3x128xf32> to vector<1x128xf32>
    %72 = vector.extract_strided_slice %28 {offsets = [1, 0], sizes = [1, 128], strides = [1, 1]} : vector<3x128xf32> to vector<1x128xf32>
    %73 = vector.extract_strided_slice %36 {offsets = [1, 0], sizes = [1, 128], strides = [1, 1]} : vector<3x128xf32> to vector<1x128xf32>
    %74 = vector.extract_strided_slice %44 {offsets = [1, 0], sizes = [1, 128], strides = [1, 1]} : vector<3x128xf32> to vector<1x128xf32>
    %75 = vector.extract_strided_slice %4 {offsets = [2, 0], sizes = [1, 128], strides = [1, 1]} : vector<3x128xf32> to vector<1x128xf32>
    %76 = vector.extract_strided_slice %12 {offsets = [2, 0], sizes = [1, 128], strides = [1, 1]} : vector<3x128xf32> to vector<1x128xf32>
    %77 = vector.extract_strided_slice %20 {offsets = [2, 0], sizes = [1, 128], strides = [1, 1]} : vector<3x128xf32> to vector<1x128xf32>
    %78 = vector.extract_strided_slice %28 {offsets = [2, 0], sizes = [1, 128], strides = [1, 1]} : vector<3x128xf32> to vector<1x128xf32>
    %79 = vector.extract_strided_slice %36 {offsets = [2, 0], sizes = [1, 128], strides = [1, 1]} : vector<3x128xf32> to vector<1x128xf32>
    %80 = vector.extract_strided_slice %44 {offsets = [2, 0], sizes = [1, 128], strides = [1, 1]} : vector<3x128xf32> to vector<1x128xf32>
    %cst_16 = arith.constant 0.000000e+00 : f32
    %81 = vector.broadcast %cst_16 : f32 to vector<1x128xf32>
    %82 = tpu.concatenate %45, %46, %47, %48, %49, %50, %51, %52, %53, %54, %55, %56, %57, %58, %59, %60 in 0 : vector<1x128xf32>, vector<1x128xf32>, vector<1x128xf32>, vector<1x128xf32>, vector<1x128xf32>, vector<1x128xf32>, vector<1x128xf32>, vector<1x128xf32>, vector<1x128xf32>, vector<1x128xf32>, vector<1x128xf32>, vector<1x128xf32>, vector<1x128xf32>, vector<1x128xf32>, vector<1x128xf32>, vector<1x128xf32> -> vector<16x128xf32>
    %83 = tpu.concatenate %61, %62, %63, %64, %65, %66, %67, %68, %69, %70, %71, %72, %73, %74, %75, %76 in 0 : vector<1x128xf32>, vector<1x128xf32>, vector<1x128xf32>, vector<1x128xf32>, vector<1x128xf32>, vector<1x128xf32>, vector<1x128xf32>, vector<1x128xf32>, vector<1x128xf32>, vector<1x128xf32>, vector<1x128xf32>, vector<1x128xf32>, vector<1x128xf32>, vector<1x128xf32>, vector<1x128xf32>, vector<1x128xf32> -> vector<16x128xf32>
    %84 = tpu.concatenate %77, %78, %79, %80, %0, %81 in 0 : vector<1x128xf32>, vector<1x128xf32>, vector<1x128xf32>, vector<1x128xf32>, vector<3x128xf32>, vector<1x128xf32> -> vector<8x128xf32>
    %85 = tpu.concatenate %82, %83, %84 in 0 : vector<16x128xf32>, vector<16x128xf32>, vector<8x128xf32> -> vector<40x128xf32>
    %86 = tpu.transpose %85, [1, 0] : vector<40x128xf32> -> vector<128x40xf32>
    %87 = vector.extract_strided_slice %86 {offsets = [0, 0], sizes = [128, 39], strides = [1, 1]} : vector<128x40xf32> to vector<128x39xf32>
    %c0_17 = arith.constant 0 : index
    %c0_18 = arith.constant 0 : index
    %88 = vector.load %arg2[%c0_17, %c0_18] : memref<128x39xf32, #tpu.memory_space<vmem>>, vector<128x39xf32>
    tpu.vector_store %arg2[%c0_17, %c0_18], %87 {strides = array<i32>} : memref<128x39xf32, #tpu.memory_space<vmem>>, vector<128x39xf32>,
    return
  }
  func.func @transform_0(%arg0: i32) -> (i32, i32) {
    %c0_i32 = arith.constant 0 : i32
    %c0_i32_0 = arith.constant 0 : i32
    return %c0_i32, %arg0 : i32, i32
  }
  func.func @transform_1(%arg0: i32) -> (i32, i32) {
    %c0_i32 = arith.constant 0 : i32
    %c0_i32_0 = arith.constant 0 : i32
    return %arg0, %c0_i32 : i32, i32
  }
}

</mosaic_0001>

<llo_original>
// kernel: tpu_custom_call.1
$region0: #{tpu_custom_call.1}
  #allocation0 [shape = 'u32[]', space=smem, size = 0x4, offset = 0x4, fixed_abs, tag = 'smem constant byte address 0x4 - core index']
  #allocation1 [shape = 'u32[144,128]{1,0:T(1,128)}', space=vmem, size = 0x12000, scoped, tag = 'internal scratch']
  %s0 = inlined_call_operand.hbm [shape: f32[3,128], index: 0, kind: input, shape index: {}]
  %s1 = inlined_call_operand.vmem [shape: f32[128,39], index: 1, kind: output, shape index: {}]
  %s2 = sld [smem:[#allocation0]]
  $region18: #{tpu_custom_call.1} parent=0
    _
  %s4 = ssub.s32 1, %s2
  %s5 = scalar_select 0, %s4, %s2
  $region1: #{tpu_custom_call.1} parent=0
    #allocation2 [shape = 'u8[2048]{0}', space=vmem, size = 0x800, scoped, tag = 'input window, operand 0, single buffered']
    #allocation3 [shape = 's32[1]{0}', space=sflag, size = 0x4, scoped, tag = 'scoped memory for tpu_custom_call.1']
    %6 = vsyncpa [#allocation3], 0
    // Predicated region
    $region2: #{tpu_custom_call.1} parent=1 // pred_check
      _
    $region3: #{tpu_custom_call.1} parent=1 // pred_check_branch
      %8 = sbr.rel (0) target = $region5
    $region4: #{tpu_custom_call.1} parent=1 // pred_region
      %s10 = ssub.s32 64, 64
      %11 = vsyncadd [#allocation3], %s10
      %s13 = sshll.u32 [#allocation2], 4
      %s14 = int_to_ptr.vmem [resolvable:$true] %s13
      %16 = dma.hbm_to_vmem [thread:$0]  %s0, 64, %s14, [#allocation3]
    $region5: #{tpu_custom_call.1} parent=1 // pred_fallthru
      _
    // Predicated region
    $region6: #{tpu_custom_call.1} parent=1 // pred_check
      _
    $region7: #{tpu_custom_call.1} parent=1 // pred_check_branch
      %18 = sbr.rel (0) target = $region9
    $region8: #{tpu_custom_call.1} parent=1 // pred_region
      %19 = dma.done [#allocation3], 64
    $region9: #{tpu_custom_call.1} parent=1 // pred_fallthru
      _
    %v20 = vld [vmem:[#allocation2] sm:$0x7]
    %v21 = vand.u32 2147483647, %v20
    %vm22 = vcmp.le.f32.partialorder %v21, 0.7853982
    %vm23 = vcmp.lt.s32.totalorder %v20, 0
    %v24 = vand.u32 %v20, 2139095040
    %v25 = vshrl.u32 %v24, 23
    %v26 = vsub.s32 %v25, 127
    %v27 = vand.u32 2147483647, %v20
    %v28 = vand.u32 %v27, 8388607
    %v29 = vor.u32 %v28, 8388608
    %v30 = vsub.s32 0, %v29
    %v31 = vadd.s32 %v26, 1
    %vm32 = vcmp.gt.s32.totalorder %v31, 0
    %v33 = vsel %vm32, %v31, 0
    %v34 = vshrl.u32 %v33, 5
    %v35 = vand.u32 %v33, 31
    %v36 = vsub.s32 32, %v35
    %v37 = vshrl.u32 683565275, %v36
    %v38 = vshll.u32 683565275, %v35
    %v39 = vshrl.u32 2475754826, %v36
    %v40 = vor.u32 %v38, %v39
    %v41 = vshll.u32 2475754826, %v35
    %v42 = vshrl.u32 2131351028, %v36
    %v43 = vor.u32 %v41, %v42
    %v44 = vshll.u32 2131351028, %v35
    %v45 = vshrl.u32 2102212464, %v36
    %v46 = vor.u32 %v44, %v45
    %v47 = vshll.u32 2102212464, %v35
    %v48 = vshrl.u32 920167782, %v36
    %v49 = vor.u32 %v47, %v48
    %v50 = vshll.u32 920167782, %v35
    %v51 = vshrl.u32 1326507024, %v36
    %v52 = vor.u32 %v50, %v51
    %vm53 = vcmp.lt.s32.totalorder %v34, 1
    %vm54 = vcmp.lt.s32.totalorder %v34, 2
    %vm55 = vcmp.lt.s32.totalorder %v34, 3
    %vm56 = vcmp.lt.s32.totalorder %v34, 4
    %v57 = vsel %vm53, %v37, %v40
    %v58 = vsel %vm56, %v46, 2102212464
    %v59 = vsel %vm55, %v43, %v58
    %v60 = vsel %vm54, %v57, %v59
    %v61 = vsel %vm53, %v40, %v43
    %v62 = vsel %vm56, %v49, 920167782
    %v63 = vsel %vm55, %v46, %v62
    %v64 = vsel %vm54, %v61, %v63
    %v65 = vsel %vm53, %v43, %v46
    %v66 = vsel %vm56, %v52, 1326507024
    %v67 = vsel %vm55, %v49, %v66
    %v68 = vsel %vm54, %v65, %v67
    %v69 = vshll.u32 %v29, 8
    %v70 = vmul.u32.u64.compose %v69, %v68
    %v71 = vextract.low.u32 %v70
    %v72 = vextract.high.u32 %v70
    %v73 = vmul.u32.u64.compose %v69, %v64
    %v74 = vextract.low.u32 %v73
    %v75 = vextract.high.u32 %v73
    %v76 = vmul.u32 %v69, %v60
    %v77 = vadd.s32 %v72, %v74
    %vm78 = vc.u32 %v72, %v74
    %v79 = vadd.s32 %v75, 1
    %v80 = vsel %vm78, %v79, %v75
    %v81 = vadd.s32 %v76, %v80
    %v82 = vadd.s32 %v81, 536870912
    %v83 = vshrl.u32 %v82, 30
    %v84 = vshll.u32 %v83, 30
    %v85 = vsub.s32 %v81, %v84
    %vm86 = vcmp.lt.s32.totalorder %v85, 0
    %v87 = vsub.s32 0, %v85
    %v88 = vsel %vm86, %v87, %v85
    %v89 = vclz %v88
    %v90 = vsub.s32 %v89, 2
    %vm91 = vcmp.gt.s32.totalorder 0, %v90
    %v92 = vsel %vm91, 0, %v90
    %v93 = vsub.s32 32, %v92
    %v94 = vshll.u32 %v85, %v92
    %v95 = vshrl.u32 %v77, %v93
    %v96 = vor.u32 %v94, %v95
    %v97 = vsub.s32 4294967266, %v92
    %v98 = vadd.s32 %v97, 127
    %v99 = vshll.u32 %v98, 23
    %v100 = vor.u32 4788187, %v99
    %v101 = vand.u32 2147483647, %v100
    %v103 = vcvt.s32.f32 %v96
    %v104 = vmul.f32 %v103, %v101
    %v105 = vxor.u32 %v104, 2147483648
    %v106 = vsel %vm23, %v105, %v104
    %v107 = vsub.s32 4, %v83
    %v108 = vsel %vm23, %v107, %v83
    %v109 = vsel %vm22, %v20, %v106
    %v110 = vsel %vm22, 0, %v108
    %v111 = vcosq.f32.pop %v109
    %v112 = vsinq.f32.pop %v109
    %vm113 = vweird.f32 %v20
    %v114 = vadd.s32 %v110, 3
    %v115 = vand.u32 %v114, 3
    %vm116 = vcmp.lt.s32.totalorder %v115, 2
    %vm117 = vcmp.eq.s32.totalorder %v115, 0
    %v118 = vxor.u32 %v112, 2147483648
    %v119 = vsel %vm117, %v111, %v118
    %vm120 = vcmp.eq.s32.totalorder %v115, 2
    %v121 = vxor.u32 %v111, 2147483648
    %v122 = vsel %vm120, %v121, %v112
    %v123 = vsel %vm116, %v119, %v122
    %v124 = vsel %vm113, nan, %v123
    %v125 = vand.u32 2147483647, %v20
    %vm126 = vcmp.le.f32.partialorder %v125, 0.7853982
    %vm127 = vcmp.lt.s32.totalorder %v20, 0
    %v128 = vand.u32 %v20, 2139095040
    %v129 = vshrl.u32 %v128, 23
    %v130 = vsub.s32 %v129, 127
    %v131 = vand.u32 2147483647, %v20
    %v132 = vand.u32 %v131, 8388607
    %v133 = vor.u32 %v132, 8388608
    %v134 = vsub.s32 0, %v133
    %v135 = vadd.s32 %v130, 1
    %vm136 = vcmp.gt.s32.totalorder %v135, 0
    %v137 = vsel %vm136, %v135, 0
    %v138 = vshrl.u32 %v137, 5
    %v139 = vand.u32 %v137, 31
    %v140 = vsub.s32 32, %v139
    %v141 = vshrl.u32 683565275, %v140
    %v142 = vshll.u32 683565275, %v139
    %v143 = vshrl.u32 2475754826, %v140
    %v144 = vor.u32 %v142, %v143
    %v145 = vshll.u32 2475754826, %v139
    %v146 = vshrl.u32 2131351028, %v140
    %v147 = vor.u32 %v145, %v146
    %v148 = vshll.u32 2131351028, %v139
    %v149 = vshrl.u32 2102212464, %v140
    %v150 = vor.u32 %v148, %v149
    %v151 = vshll.u32 2102212464, %v139
    %v152 = vshrl.u32 920167782, %v140
    %v153 = vor.u32 %v151, %v152
    %v154 = vshll.u32 920167782, %v139
    %v155 = vshrl.u32 1326507024, %v140
    %v156 = vor.u32 %v154, %v155
    %vm157 = vcmp.lt.s32.totalorder %v138, 1
    %vm158 = vcmp.lt.s32.totalorder %v138, 2
    %vm159 = vcmp.lt.s32.totalorder %v138, 3
    %vm160 = vcmp.lt.s32.totalorder %v138, 4
    %v161 = vsel %vm157, %v141, %v144
    %v162 = vsel %vm160, %v150, 2102212464
    %v163 = vsel %vm159, %v147, %v162
    %v164 = vsel %vm158, %v161, %v163
    %v165 = vsel %vm157, %v144, %v147
    %v166 = vsel %vm160, %v153, 920167782
    %v167 = vsel %vm159, %v150, %v166
    %v168 = vsel %vm158, %v165, %v167
    %v169 = vsel %vm157, %v147, %v150
    %v170 = vsel %vm160, %v156, 1326507024
    %v171 = vsel %vm159, %v153, %v170
    %v172 = vsel %vm158, %v169, %v171
    %v173 = vshll.u32 %v133, 8
    %v174 = vmul.u32.u64.compose %v173, %v172
    %v175 = vextract.low.u32 %v174
    %v176 = vextract.high.u32 %v174
    %v177 = vmul.u32.u64.compose %v173, %v168
    %v178 = vextract.low.u32 %v177
    %v179 = vextract.high.u32 %v177
    %v180 = vmul.u32 %v173, %v164
    %v181 = vadd.s32 %v176, %v178
    %vm182 = vc.u32 %v176, %v178
    %v183 = vadd.s32 %v179, 1
    %v184 = vsel %vm182, %v183, %v179
    %v185 = vadd.s32 %v180, %v184
    %v186 = vadd.s32 %v185, 536870912
    %v187 = vshrl.u32 %v186, 30
    %v188 = vshll.u32 %v187, 30
    %v189 = vsub.s32 %v185, %v188
    %vm190 = vcmp.lt.s32.totalorder %v189, 0
    %v191 = vsub.s32 0, %v189
    %v192 = vsel %vm190, %v191, %v189
    %v193 = vclz %v192
    %v194 = vsub.s32 %v193, 2
    %vm195 = vcmp.gt.s32.totalorder 0, %v194
    %v196 = vsel %vm195, 0, %v194
    %v197 = vsub.s32 32, %v196
    %v198 = vshll.u32 %v189, %v196
    %v199 = vshrl.u32 %v181, %v197
    %v200 = vor.u32 %v198, %v199
    %v201 = vsub.s32 4294967266, %v196
    %v202 = vadd.s32 %v201, 127
    %v203 = vshll.u32 %v202, 23
    %v204 = vor.u32 4788187, %v203
    %v205 = vand.u32 2147483647, %v204
    %v207 = vcvt.s32.f32 %v200
    %v208 = vmul.f32 %v207, %v205
    %v209 = vxor.u32 %v208, 2147483648
    %v210 = vsel %vm127, %v209, %v208
    %v211 = vsub.s32 4, %v187
    %v212 = vsel %vm127, %v211, %v187
    %v213 = vsel %vm126, %v20, %v210
    %v214 = vsel %vm126, 0, %v212
    %v215 = vcosq.f32.pop %v213
    %v216 = vsinq.f32.pop %v213
    %vm217 = vweird.f32 %v20
    %v218 = vand.u32 %v214, 3
    %vm219 = vcmp.lt.s32.totalorder %v218, 2
    %vm220 = vcmp.eq.s32.totalorder %v218, 0
    %v221 = vxor.u32 %v216, 2147483648
    %v222 = vsel %vm220, %v215, %v221
    %vm223 = vcmp.eq.s32.totalorder %v218, 2
    %v224 = vxor.u32 %v215, 2147483648
    %v225 = vsel %vm223, %v224, %v216
    %v226 = vsel %vm219, %v222, %v225
    %v227 = vsel %vm217, nan, %v226
    %v228 = vmul.f32 %v124, 2.0
    %v229 = vmul.f32 %v228, %v227
    %v230 = vmul.f32 %v228, %v124
    %v231 = vsub.f32 1.0, %v230
    %v232 = vmul.f32 %v229, 2.0
    %v233 = vmul.f32 %v232, %v231
    %v234 = vmul.f32 %v232, %v229
    %v235 = vsub.f32 1.0, %v234
    %v236 = vmul.f32 %v233, 2.0
    %v237 = vmul.f32 %v236, %v235
    %v238 = vmul.f32 %v236, %v233
    %v239 = vsub.f32 1.0, %v238
    %v240 = vmul.f32 %v237, 2.0
    %v241 = vmul.f32 %v240, %v239
    %v242 = vmul.f32 %v240, %v237
    %v243 = vsub.f32 1.0, %v242
    %v244 = vmul.f32 %v241, 2.0
    %v245 = vmul.f32 %v244, %v243
    %v246 = vmul.f32 %v244, %v241
    %v247 = vsub.f32 1.0, %v246
    %v249 = vrot.slane %v229, 7
    %v252 = vrot.slane %v233, 6
    %v255 = vrot.slane %v237, 5
    %v258 = vrot.slane %v241, 4
    %v261 = vrot.slane %v245, 3
    %v264 = vrot.slane %v124, 3
    %v266 = vrot.slane %v229, 2
    %v268 = vrot.slane %v233, 1
    %v270 = vrot.slane %v241, 7
    %v272 = vrot.slane %v245, 6
    %v274 = vrot.slane %v124, 6
    %v276 = vrot.slane %v229, 5
    %v278 = vrot.slane %v233, 4
    %v280 = vrot.slane %v237, 3
    %vm282 = vcmask 1040384
    %v283 = vsel %vm282, %v124, %v249
    %vm284 = vcmask 1041408
    %v285 = vsel %vm284, %v283, %v252
    %vm286 = vcmask 1042432
    %v287 = vsel %vm286, %v285, %v255
    %vm288 = vcmask 1043456
    %v289 = vsel %vm288, %v287, %v258
    %vm290 = vcmask 1044480
    %v291 = vsel %vm290, %v289, %v261
    %vm292 = vcmask 1045504
    %v293 = vsel %vm292, %v291, %v264
    %vm294 = vcmask 1046528
    %v295 = vsel %vm294, %v293, %v266
    %v296 = vsel %vm282, %v268, %v237
    %v297 = vsel %vm284, %v296, %v270
    %v298 = vsel %vm286, %v297, %v272
    %v299 = vsel %vm288, %v298, %v274
    %v300 = vsel %vm290, %v299, %v276
    %v301 = vsel %vm292, %v300, %v278
    %v302 = vsel %vm294, %v301, %v280
    %v303 = vrot.slane %v241, 2
    %v305 = vrot.slane %v245, 1
    %v308 = vrot.slane %v227, 6
    %v311 = vrot.slane %v231, 5
    %v314 = vrot.slane %v235, 4
    %v317 = vrot.slane %v239, 3
    %v320 = vrot.slane %v243, 2
    %v323 = vrot.slane %v247, 1
    %v325 = vrot.slane %v227, 1
    %v327 = vrot.slane %v235, 7
    %v329 = vrot.slane %v239, 6
    %v331 = vrot.slane %v243, 5
    %v333 = vrot.slane %v247, 4
    %v335 = vrot.slane %v227, 4
    %v337 = vrot.slane %v231, 3
    %v339 = vsel %vm282, %v303, %v305
    %v340 = vsel %vm284, %v339, %v308
    %v341 = vsel %vm286, %v340, %v311
    %v342 = vsel %vm288, %v341, %v314
    %v343 = vsel %vm290, %v342, %v317
    %v344 = vsel %vm292, %v343, %v320
    %v345 = vsel %vm294, %v344, %v323
    %v346 = vsel %vm282, %v325, %v231
    %v347 = vsel %vm284, %v346, %v327
    %v348 = vsel %vm286, %v347, %v329
    %v349 = vsel %vm288, %v348, %v331
    %v350 = vsel %vm290, %v349, %v333
    %v351 = vsel %vm292, %v350, %v335
    %v352 = vsel %vm294, %v351, %v337
    %v353 = vrot.slane %v235, 2
    %v355 = vrot.slane %v239, 1
    %v357 = vrot.slane %v247, 7
    %v360 = vrot.slane %v20, 4
    %v362 = vsel %vm282, %v353, %v355
    %v363 = vsel %vm284, %v362, %v243
    %v364 = vsel %vm286, %v363, %v357
    %v365 = vsel %vm288, %v364, %v360
    %v366 = vsel %vm294, %v365, 0.0
    %367 = vxpose.xlu0.b32.start [1/16] %v295, 128
    %368 = vxpose.xlu0.b32.cont [2/16] %v302, 128
    %369 = vxpose.xlu0.b32.cont [3/16] %v345, 128
    %370 = vxpose.xlu0.b32.cont [4/16] %v352, 128
    %371 = vxpose.xlu0.b32.cont [5/16] %v366, 128
    %372 = vxpose.xlu0.b32.cont [6/16] 0.0, 128
    %373 = vxpose.xlu0.b32.cont [7/16] 0.0, 128
    %374 = vxpose.xlu0.b32.cont [8/16] 0.0, 128
    %375 = vxpose.xlu0.b32.cont [9/16] 0.0, 128
    %376 = vxpose.xlu0.b32.cont [10/16] 0.0, 128
    %377 = vxpose.xlu0.b32.cont [11/16] 0.0, 128
    %378 = vxpose.xlu0.b32.cont [12/16] 0.0, 128
    %379 = vxpose.xlu0.b32.cont [13/16] 0.0, 128
    %380 = vxpose.xlu0.b32.cont [14/16] 0.0, 128
    %381 = vxpose.xlu0.b32.cont [15/16] 0.0, 128
    %382 = vxpose.xlu0.b32.end [16/16] 0.0, 128
    %v383 = vpop.trf.xlu0
    %v384 = vpop.trf.xlu0
    %v385 = vpop.trf.xlu0
    %v386 = vpop.trf.xlu0
    %v387 = vpop.trf.xlu0
    %v388 = vpop.trf.xlu0
    %v389 = vpop.trf.xlu0
    %v390 = vpop.trf.xlu0
    %v391 = vpop.trf.xlu0
    %v392 = vpop.trf.xlu0
    %v393 = vpop.trf.xlu0
    %v394 = vpop.trf.xlu0
    %v395 = vpop.trf.xlu0
    %v396 = vpop.trf.xlu0
    %v397 = vpop.trf.xlu0
    %v398 = vpop.trf.xlu0
    %vm399 = vcmask 318464
    %400 = vst.msk [vmem:[%s1] sm:$0xff] %vm399, %v383
    %401 = vst.msk [vmem:[%s1 + $0x8] sm:$0xff] %vm399, %v384
    %402 = vst.msk [vmem:[%s1 + $0x10] sm:$0xff] %vm399, %v385
    %403 = vst.msk [vmem:[%s1 + $0x18] sm:$0xff] %vm399, %v386
    %404 = vst.msk [vmem:[%s1 + $0x20] sm:$0xff] %vm399, %v387
    %405 = vst.msk [vmem:[%s1 + $0x28] sm:$0xff] %vm399, %v388
    %406 = vst.msk [vmem:[%s1 + $0x30] sm:$0xff] %vm399, %v389
    %407 = vst.msk [vmem:[%s1 + $0x38] sm:$0xff] %vm399, %v390
    %408 = vst.msk [vmem:[%s1 + $0x40] sm:$0xff] %vm399, %v391
    %409 = vst.msk [vmem:[%s1 + $0x48] sm:$0xff] %vm399, %v392
    %410 = vst.msk [vmem:[%s1 + $0x50] sm:$0xff] %vm399, %v393
    %411 = vst.msk [vmem:[%s1 + $0x58] sm:$0xff] %vm399, %v394
    %412 = vst.msk [vmem:[%s1 + $0x60] sm:$0xff] %vm399, %v395
    %413 = vst.msk [vmem:[%s1 + $0x68] sm:$0xff] %vm399, %v396
    %414 = vst.msk [vmem:[%s1 + $0x70] sm:$0xff] %vm399, %v397
    %415 = vst.msk [vmem:[%s1 + $0x78] sm:$0xff] %vm399, %v398
    // Predicated region
    $region10: #{tpu_custom_call.1} parent=1 // pred_check
      _
    $region11: #{tpu_custom_call.1} parent=1 // pred_check_branch
      %417 = sbr.rel (0) target = $region13
    $region12: #{tpu_custom_call.1} parent=1 // pred_region
      _
    $region13: #{tpu_custom_call.1} parent=1 // pred_fallthru
      _
    // Predicated region
    $region14: #{tpu_custom_call.1} parent=1 // pred_check
      _
    $region15: #{tpu_custom_call.1} parent=1 // pred_check_branch
      %419 = sbr.rel (0) target = $region17
    $region16: #{tpu_custom_call.1} parent=1 // pred_region
      _
    $region17: #{tpu_custom_call.1} parent=1 // pred_fallthru
      _
    %420 = vsyncpa [#allocation3], 1

</llo_original>
